<compile_context>
chip_gen: v6e
topology: v6e:2x2x1
jax: 0.10.0
libtpu: 0.0.40
codegen_flags: <defaults>
</compile_context>

<pallas_src>
import functools

import jax
import jax.numpy as jnp
from jax.experimental import pallas as pl
from jax.experimental.pallas import tpu as pltpu


_TARGET_TILE_M = 512          # target output rows (tile_h * WO) per grid step
_LANE = 128                   # TPU lane width


def _round_up(x, m):
    return ((x + m - 1) // m) * m


def _vmem_budget_bytes():
    """Per-grid-step VMEM budget: half of physical VMEM (128 MiB on v5e/v6e,
    64 MiB on v7x), capped at 64 MiB.  Also passed to Mosaic as
    vmem_limit_bytes so the scoped limit does not silently shrink it."""
    cap = 64 * 1024 * 1024                       # worst case (v7x) fallback
    try:
        cap = int(pltpu.get_tpu_info().vmem_capacity_bytes)
    except Exception:
        pass
    return min(cap // 2, 64 * 1024 * 1024)


def _vmem_step_bytes(tile_h, hp, wp, c, wo, o_pad, kh, kw, stride):
    """Pessimistic per-grid-step VMEM estimate (layout-padded, double-buffered
    inputs/outputs plus in-kernel values)."""
    m_tile = tile_h * wo
    k_dim = kh * kw * c
    c_pad = _round_up(c, _LANE)
    wp_pad = _round_up(wp, 16)
    win_rows = (tile_h - 1) * stride + kh
    img = 2 * hp * wp_pad * c_pad * 2                              # bf16 image x2
    win = win_rows * wp_pad * c_pad * 2                            # loaded window value
    lhs = 2 * _round_up(m_tile, 16) * _round_up(k_dim, _LANE) * 2  # im2col LHS (bf16)
    wgt = 2 * _round_up(k_dim, 16) * o_pad * 2                     # bf16 weights x2
    res = 2 * _round_up(m_tile, 8) * o_pad * 4                     # dot result + transpose
    out = 2 * _round_up(o_pad, 8) * _round_up(m_tile, _LANE) * 4   # out tile x2
    return img + win + lhs + wgt + res + out


# ----------------------------- Pallas kernel --------------------------------
def _make_conv_kernel(*, kh, kw, c, o, o_pad, tile_h, wo, stride):
    win_rows = (tile_h - 1) * stride + kh
    m_tile = tile_h * wo
    k_dim = kh * kw * c

    def kernel(x_ref, w_ref, b_ref, o_ref):
        # x_ref: (1, Hp, Wp, C)        bf16  whole padded image (VMEM-resident)
        # w_ref: (KH*KW*C, O_pad)      bf16  im2col-ordered weights
        # b_ref: (1, O_pad)            f32
        # o_ref: (1, 1, O, m_tile)     f32   transposed, channel-compact tile
        rt = pl.program_id(1)
        r0 = pl.multiple_of(rt * (tile_h * stride), tile_h * stride)

        taps = []
        if stride == 1:
            win = x_ref[0, pl.ds(r0, win_rows), :, :]        # (win_rows, Wp, C)
            for i in range(kh):
                for j in range(kw):
                    taps.append(win[i:i + tile_h, j:j + wo, :])   # (tile_h, wo, C)
        else:
            # Strided ref loads (no strided slicing of a materialized value).
            for i in range(kh):
                for j in range(kw):
                    taps.append(x_ref[0,
                                      pl.ds(r0 + i, tile_h, stride=stride),
                                      pl.ds(j, wo, stride=stride),
                                      :])

        # Fused im2col: single (m_tile, KH*KW*C) @ (KH*KW*C, O_pad) matmul,
        # f32 accumulation on the MXU; bias folded into the same expression.
        # TODO(synk): for very large C*KH*KW, add a K ("arbitrary") grid axis
        # with a VMEM f32 accumulator instead of one giant LHS.
        lhs = jnp.concatenate(taps, axis=-1).reshape(m_tile, k_dim)
        res = jnp.dot(lhs, w_ref[...], preferred_element_type=jnp.float32)
        res = res + b_ref[...]                               # (m_tile, O_pad)

        # Transposed, compact store: lanes = spatial (dense vst), sublanes = O.
        out_t = jnp.transpose(res)                           # (O_pad, m_tile), XLU
        o_ref[...] = out_t[:o, :].astype(o_ref.dtype).reshape(1, 1, o, m_tile)

    return kernel


# ------------------------------- wrapper -------------------------------------
@functools.partial(jax.jit, static_argnames=("stride", "pad"))
def analyzed_conv2d(x_nchw, weight_oikk, bias_o, *, stride=1, pad=1):
    """Forward pass equivalent to AnalyzedConv2d(...)(x) == nn.Conv2d(...)(x)."""
    n, c, h, w = x_nchw.shape
    o, c_w, kh, kw = weight_oikk.shape
    # TODO(synk): groups/dilation variants of nn.Conv2d are not implemented.
    assert c == c_w, "grouped conv not supported"

    ho = (h + 2 * pad - kh) // stride + 1
    wo = (w + 2 * pad - kw) // stride + 1
    k_dim = kh * kw * c
    # Matmul N kept lane-aligned (the padded columns never reach HBM: the
    # kernel slices to the true O before storing).
    # TODO(synk): for very large O, add an output-channel grid axis (256-wide
    # tiles on v6e/v7x).
    o_pad = _round_up(o, _LANE)

    # ---- tile selection: VMEM-aware (v7x = 64 MiB) and megacore-aware ----
    budget = _vmem_budget_bytes()
    wp = w + 2 * pad
    tile_h = max(1, min(ho, max(1, _TARGET_TILE_M // max(wo, 1))))
    while tile_h > 1 and _vmem_step_bytes(tile_h, (ho + tile_h) * stride + kh,
                                          wp, c, wo, o_pad, kh, kw,
                                          stride) > budget:
        tile_h = max(1, tile_h // 2)
    if n * pl.cdiv(ho, tile_h) < 2 and ho > 1:   # keep both TensorCores busy
        tile_h = pl.cdiv(ho, 2)
    n_ht = pl.cdiv(ho, tile_h)
    ho_pad = n_ht * tile_h                       # ragged rows handled by pad+slice
    m_tile = tile_h * wo

    # ---- NCHW -> NHWC bf16, zero-pad (conv padding + ragged row-tile rows) ----
    # TODO(synk): this transpose only exists to honour the PyTorch NCHW
    # contract; an NHWC-native caller would drop this extra HBM pass.
    # TODO(synk): for tiny C the (…, C) last dim is lane-padded inside VMEM; a
    # channel-fused (Hp, Wp*C) resident layout (or halo-window manual DMA via
    # memory_space=pl.ANY for huge images) would remove that inflation.
    x_nhwc = jnp.transpose(x_nchw, (0, 2, 3, 1)).astype(jnp.bfloat16)
    hp_req = (ho_pad - 1) * stride + kh
    extra_rows = max(0, hp_req - (h + 2 * pad))
    x_p = jnp.pad(x_nhwc, ((0, 0), (pad, pad + extra_rows), (pad, pad), (0, 0)))
    hp = x_p.shape[1]

    # ---- weights: (O,C,KH,KW) -> (KH*KW*C, O_pad) bf16 (im2col order) ----
    w2 = jnp.transpose(weight_oikk, (2, 3, 1, 0)).reshape(k_dim, o)
    w2 = jnp.pad(w2, ((0, 0), (0, o_pad - o))).astype(jnp.bfloat16)
    b_row = jnp.pad(bias_o.astype(jnp.float32), (0, o_pad - o)).reshape(1, o_pad)

    kernel = _make_conv_kernel(kh=kh, kw=kw, c=c, o=o, o_pad=o_pad,
                               tile_h=tile_h, wo=wo, stride=stride)

    # TODO(synk): pipeline_mode=pl.Buffered(1) on the weight/bias (and image)
    # BlockSpecs would halve their VMEM residency (mainly relevant on v7x).
    out = pl.pallas_call(
        kernel,
        out_shape=jax.ShapeDtypeStruct((n, n_ht, o, m_tile), jnp.float32),
        grid_spec=pltpu.PrefetchScalarGridSpec(
            num_scalar_prefetch=0,
            grid=(n, n_ht),
            in_specs=[
                # whole padded image of sample b, reused across its row tiles
                pl.BlockSpec((1, hp, wp, c), lambda b, r: (b, 0, 0, 0)),
                pl.BlockSpec((k_dim, o_pad), lambda b, r: (0, 0)),
                pl.BlockSpec((1, o_pad), lambda b, r: (0, 0)),
            ],
            out_specs=pl.BlockSpec((1, 1, o, m_tile),
                                   lambda b, r: (b, r, 0, 0)),
        ),
        compiler_params=pltpu.CompilerParams(
            dimension_semantics=("parallel", "parallel"),
            vmem_limit_bytes=int(budget)),
    )(x_p, w2, b_row)

    # (N, n_ht, O, tile_h*WO) -> NCHW.  The n_ht<->O swap is a no-op when
    # n_ht == 1 and only moves compact (un-padded) f32 bytes otherwise.
    out = out.reshape(n, n_ht, o, tile_h, wo)
    out = jnp.transpose(out, (0, 2, 1, 3, 4)).reshape(n, o, ho_pad, wo)
    return out[:, :, :ho, :]


# --------------------------------- main ---------------------------------------
if __name__ == "__main__":
    # Conv2d(in_channels=4, out_channels=8, kernel_size=3, stride=1, padding=1)
    N, C_IN, H, W = 2, 4, 16, 16
    C_OUT, KH, KW = 8, 3, 3
    STRIDE, PAD = 1, 1

    key = jax.random.PRNGKey(0)
    kx, kw_, kb = jax.random.split(key, 3)

    x = jax.random.normal(kx, (N, C_IN, H, W), dtype=jnp.float32)

    # Deterministic init mimicking PyTorch's uniform(-b, b), b = 1/sqrt(fan_in).
    fan_in = C_IN * KH * KW
    bound = 1.0 / float(fan_in) ** 0.5
    weight = jax.random.uniform(kw_, (C_OUT, C_IN, KH, KW),
                                minval=-bound, maxval=bound, dtype=jnp.float32)
    bias = jax.random.uniform(kb, (C_OUT,), minval=-bound, maxval=bound,
                              dtype=jnp.float32)

    out = analyzed_conv2d(x, weight, bias, stride=STRIDE, pad=PAD)
    out = jax.block_until_ready(out)

    # Reference with the same bf16 inputs / f32 accumulation as the kernel.
    ref = jax.lax.conv_general_dilated(
        x.astype(jnp.bfloat16), weight.astype(jnp.bfloat16),
        window_strides=(STRIDE, STRIDE),
        padding=((PAD, PAD), (PAD, PAD)),
        dimension_numbers=("NCHW", "OIHW", "NCHW"),
        preferred_element_type=jnp.float32,
    ) + bias.reshape(1, C_OUT, 1, 1)
    ref = jax.block_until_ready(ref)

    assert out.shape == (N, C_OUT, H, W), out.shape
    assert out.dtype == jnp.float32, out.dtype
    max_err = float(jnp.max(jnp.abs(out - ref)))
    assert max_err < 1e-3, max_err

    print("KERNEL_OK")
</pallas_src>

<mosaic_0001>
module attributes {stable_mosaic.version = 11 : i64} {
  func.func @kernel(%arg0: i32, %arg1: i32, %arg2: memref<1x18x18x4xbf16, #tpu.memory_space<vmem>>, %arg3: memref<36x128xbf16, #tpu.memory_space<vmem>>, %arg4: memref<1x128xf32, #tpu.memory_space<vmem>>, %arg5: memref<1x1x8x256xf32, #tpu.memory_space<vmem>>) attributes {dimension_semantics = [#tpu.dimension_semantics<parallel>, #tpu.dimension_semantics<parallel>], iteration_bounds = array<i64: 2, 1>, scalar_prefetch = 0 : i64, scratch_operands = 0 : i64, tpu.core_type = #tpu.core_type<tc>, window_params = [{transform_indices = @transform_0, window_bounds = array<i64: 1, 18, 18, 4>}, {pipeline_mode = #tpu.pipeline_mode<synchronous>, transform_indices = @transform_1, window_bounds = array<i64: 36, 128>}, {pipeline_mode = #tpu.pipeline_mode<synchronous>, transform_indices = @transform_2, window_bounds = array<i64: 1, 128>}, {transform_indices = @transform_3, window_bounds = array<i64: 1, 1, 8, 256>}]} {
    %c16_i32 = arith.constant 16 : i32
    %0 = arith.muli %arg1, %c16_i32 : i32
    %1 = tpu.assume_multiple %0, 16 : i32
    %c0 = arith.constant 0 : index
    %2 = arith.index_cast %1 : i32 to index
    %c0_0 = arith.constant 0 : index
    %c0_1 = arith.constant 0 : index
    %3 = vector.load %arg2[%c0, %2, %c0_0, %c0_1] : memref<1x18x18x4xbf16, #tpu.memory_space<vmem>>, vector<1x18x18x4xbf16>
    %4 = vector.shape_cast %3 : vector<1x18x18x4xbf16> to vector<18x18x4xbf16>
    %5 = vector.extract_strided_slice %4 {offsets = [0, 0, 0], sizes = [16, 16, 4], strides = [1, 1, 1]} : vector<18x18x4xbf16> to vector<16x16x4xbf16>
    %6 = vector.extract_strided_slice %4 {offsets = [0, 1, 0], sizes = [16, 16, 4], strides = [1, 1, 1]} : vector<18x18x4xbf16> to vector<16x16x4xbf16>
    %7 = vector.extract_strided_slice %4 {offsets = [0, 2, 0], sizes = [16, 16, 4], strides = [1, 1, 1]} : vector<18x18x4xbf16> to vector<16x16x4xbf16>
    %8 = vector.extract_strided_slice %4 {offsets = [1, 0, 0], sizes = [16, 16, 4], strides = [1, 1, 1]} : vector<18x18x4xbf16> to vector<16x16x4xbf16>
    %9 = vector.extract_strided_slice %4 {offsets = [1, 1, 0], sizes = [16, 16, 4], strides = [1, 1, 1]} : vector<18x18x4xbf16> to vector<16x16x4xbf16>
    %10 = vector.extract_strided_slice %4 {offsets = [1, 2, 0], sizes = [16, 16, 4], strides = [1, 1, 1]} : vector<18x18x4xbf16> to vector<16x16x4xbf16>
    %11 = vector.extract_strided_slice %4 {offsets = [2, 0, 0], sizes = [16, 16, 4], strides = [1, 1, 1]} : vector<18x18x4xbf16> to vector<16x16x4xbf16>
    %12 = vector.extract_strided_slice %4 {offsets = [2, 1, 0], sizes = [16, 16, 4], strides = [1, 1, 1]} : vector<18x18x4xbf16> to vector<16x16x4xbf16>
    %13 = vector.extract_strided_slice %4 {offsets = [2, 2, 0], sizes = [16, 16, 4], strides = [1, 1, 1]} : vector<18x18x4xbf16> to vector<16x16x4xbf16>
    %14 = tpu.concatenate %5, %6, %7, %8, %9, %10, %11, %12, %13 in 2 : vector<16x16x4xbf16>, vector<16x16x4xbf16>, vector<16x16x4xbf16>, vector<16x16x4xbf16>, vector<16x16x4xbf16>, vector<16x16x4xbf16>, vector<16x16x4xbf16>, vector<16x16x4xbf16>, vector<16x16x4xbf16> -> vector<16x16x36xbf16>
    %15 = vector.shape_cast %14 : vector<16x16x36xbf16> to vector<256x36xbf16>
    %c0_2 = arith.constant 0 : index
    %c0_3 = arith.constant 0 : index
    %16 = vector.load %arg3[%c0_2, %c0_3] : memref<36x128xbf16, #tpu.memory_space<vmem>>, vector<36x128xbf16>
    %cst = arith.constant dense<0.000000e+00> : vector<256x128xf32>
    %17 = tpu.matmul %15, %16, %cst {dimension_numbers = #tpu.dot_dimension_numbers<[1], [0], [0], [1], [0, 0, 1, 1], [], []>} : vector<256x36xbf16>, vector<36x128xbf16>, vector<256x128xf32> -> vector<256x128xf32>
    %c0_4 = arith.constant 0 : index
    %c0_5 = arith.constant 0 : index
    %18 = vector.load %arg4[%c0_4, %c0_5] : memref<1x128xf32, #tpu.memory_space<vmem>>, vector<1x128xf32>
    %19 = vector.broadcast %18 : vector<1x128xf32> to vector<256x128xf32>
    %20 = arith.addf %17, %19 : vector<256x128xf32>
    %21 = tpu.transpose %20, [1, 0] : vector<256x128xf32> -> vector<128x256xf32>
    %22 = vector.extract_strided_slice %21 {offsets = [0, 0], sizes = [8, 256], strides = [1, 1]} : vector<128x256xf32> to vector<8x256xf32>
    %23 = vector.shape_cast %22 : vector<8x256xf32> to vector<1x1x8x256xf32>
    %c0_6 = arith.constant 0 : index
    %c0_7 = arith.constant 0 : index
    %c0_8 = arith.constant 0 : index
    %c0_9 = arith.constant 0 : index
    %24 = vector.load %arg5[%c0_6, %c0_7, %c0_8, %c0_9] : memref<1x1x8x256xf32, #tpu.memory_space<vmem>>, vector<1x1x8x256xf32>
    tpu.vector_store %arg5[%c0_6, %c0_7, %c0_8, %c0_9], %23 {strides = array<i32>} : memref<1x1x8x256xf32, #tpu.memory_space<vmem>>, vector<1x1x8x256xf32>,
    return
  }
  func.func @transform_0(%arg0: i32, %arg1: i32) -> (i32, i32, i32, i32) {
    %c0_i32 = arith.constant 0 : i32
    %c0_i32_0 = arith.constant 0 : i32
    %c0_i32_1 = arith.constant 0 : i32
    %c0_i32_2 = arith.constant 0 : i32
    return %arg0, %c0_i32, %c0_i32_0, %c0_i32_1 : i32, i32, i32, i32
  }
  func.func @transform_1(%arg0: i32, %arg1: i32) -> (i32, i32) {
    %c0_i32 = arith.constant 0 : i32
    %c0_i32_0 = arith.constant 0 : i32
    %c0_i32_1 = arith.constant 0 : i32
    return %c0_i32, %c0_i32_0 : i32, i32
  }
  func.func @transform_2(%arg0: i32, %arg1: i32) -> (i32, i32) {
    %c0_i32 = arith.constant 0 : i32
    %c0_i32_0 = arith.constant 0 : i32
    %c0_i32_1 = arith.constant 0 : i32
    return %c0_i32, %c0_i32_0 : i32, i32
  }
  func.func @transform_3(%arg0: i32, %arg1: i32) -> (i32, i32, i32, i32) {
    %c0_i32 = arith.constant 0 : i32
    %c0_i32_0 = arith.constant 0 : i32
    %c0_i32_1 = arith.constant 0 : i32
    return %arg0, %arg1, %c0_i32, %c0_i32_0 : i32, i32, i32, i32
  }
}

</mosaic_0001>

<llo_original>
// kernel: analyzed_conv2d.1
$region0: #{analyzed_conv2d.1}
  #allocation0 [shape = 'u32[]', space=smem, size = 0x4, offset = 0x4, fixed_abs, tag = 'smem constant byte address 0x4 - core index']
  #allocation1 [shape = 'u32[144,128]{1,0:T(1,128)}', space=vmem, size = 0x12000, scoped, tag = 'internal scratch']
  %s0 = inlined_call_operand.vmem [shape: bf16[2,18,18,4], index: 0, kind: input, shape index: {}]
  %s1 = inlined_call_operand.vmem [shape: bf16[36,128], index: 1, kind: input, shape index: {}]
  %s2 = inlined_call_operand.vmem [shape: f32[1,128], index: 2, kind: input, shape index: {}]
  %s3 = inlined_call_operand.vmem [shape: f32[2,1,8,256], index: 3, kind: output, shape index: {}]
  %s4 = sld [smem:[#allocation0]]
  $region45: #{analyzed_conv2d.1} parent=0
    _
  %s6 = ssub.s32 1, %s4
  %s7 = scalar_select 0, %s6, %s4
  loop: start=0, step=1, limit=4
  $region2: #{analyzed_conv2d.1} parent=0 // loop_pre_header
    _
  $region3: #{analyzed_conv2d.1} parent=0 // loop_header
    %s9 = sphi 0, %s13
    %p10 = scmp.ge.s32.totalorder %s9, 4
    %s16 = sphi 0, %s28
    %s17 = sphi 0, %s24
    %s18 = sphi 0, %s16
    %s19 = sphi 0, %s17
    %s20 = sphi 0, %s18
    %s21 = sphi 0, %s19
    %s31 = sphi 0, %s33
    %s34 = sphi 0, %s31
    %s35 = sphi 0, %s34
    %s51 = sphi 0, %s35
    %s55 = sphi 0, %s55
    %s57 = sphi 0, %s55
    %s58 = sphi 0, %s57
    %s72 = sphi 0, %s58
    %s76 = sphi 0, %s76
    %s78 = sphi 0, %s76
    %s79 = sphi 0, %s78
    %s93 = sphi 0, %s79
    %s101 = sphi 0, %s103
    %s104 = sphi 0, %s101
    %s105 = sphi 0, %s104
    %s121 = sphi 0, %s105
  $region4: #{analyzed_conv2d.1} parent=0 // loop_header_branch
    %12 = sbr.rel (%p10) target = $region8
  $region5: #{analyzed_conv2d.1} parent=0 // loop_body
    %s14 = ssub.s32 %s9, 1
    %s15 = ssub.s32 %s9, 2
    %s22 = sadd.s32 1, %s17
    %p23 = scmp.ge.s32.totalorder %s22, 1
    %s24 = scalar_select %p23, 0, %s22
    %s25 = sadd.s32 1, %s16
    %s26 = scalar_select %p23, %s25, %s16
    %p27 = scmp.ge.s32.totalorder %s26, 2
    %s28 = scalar_select %p27, 0, %s26
    %s29 = ssub.s32 %s16, %s28
    %p30 = scmp.eq.s32.totalorder %s29, 0
    %s32 = sadd.s32 %s31, 1
    %s33 = scalar_select %p30, %s31, %s32
    %p36 = pneg %p30
    %p37 = scmp.eq.s32.totalorder %s9, 1
    %p38 = por %p36, %p37
    %p39 = scmp.ne.s32.totalorder %s31, %s34
    %p40 = scmp.eq.s32.totalorder %s9, 0
    %p41 = por %p39, %p40
    %p42 = scmp.ne.s32.totalorder %s31, %s34
    %p43 = scmp.eq.s32.totalorder %s14, 1
    %p44 = por %p42, %p43
    %p45 = scmp.ne.s32.totalorder %s34, %s35
    %p46 = scmp.eq.s32.totalorder %s14, 0
    %p47 = por %p45, %p46
    %p48 = scmp.ne.s32.totalorder %s34, %s35
    %p49 = scmp.eq.s32.totalorder %s15, 1
    %p50 = por %p48, %p49
    %p52 = scmp.ne.s32.totalorder %s35, %s51
    %p53 = scmp.eq.s32.totalorder %s15, 0
    %p54 = por %p52, %p53
    %s56 = sadd.s32 %s55, 1
    %p59 = scmp.eq.s32.totalorder %s9, 1
    %p60 = scmp.ne.s32.totalorder %s55, %s57
    %p61 = scmp.eq.s32.totalorder %s9, 0
    %p62 = por %p60, %p61
    %p63 = scmp.ne.s32.totalorder %s55, %s57
    %p64 = scmp.eq.s32.totalorder %s14, 1
    %p65 = por %p63, %p64
    %p66 = scmp.ne.s32.totalorder %s57, %s58
    %p67 = scmp.eq.s32.totalorder %s14, 0
    %p68 = por %p66, %p67
    %p69 = scmp.ne.s32.totalorder %s57, %s58
    %p70 = scmp.eq.s32.totalorder %s15, 1
    %p71 = por %p69, %p70
    %p73 = scmp.ne.s32.totalorder %s58, %s72
    %p74 = scmp.eq.s32.totalorder %s15, 0
    %p75 = por %p73, %p74
    %s77 = sadd.s32 %s76, 1
    %p80 = scmp.eq.s32.totalorder %s9, 1
    %p81 = scmp.ne.s32.totalorder %s76, %s78
    %p82 = scmp.eq.s32.totalorder %s9, 0
    %p83 = por %p81, %p82
    %p84 = scmp.ne.s32.totalorder %s76, %s78
    %p85 = scmp.eq.s32.totalorder %s14, 1
    %p86 = por %p84, %p85
    %p87 = scmp.ne.s32.totalorder %s78, %s79
    %p88 = scmp.eq.s32.totalorder %s14, 0
    %p89 = por %p87, %p88
    %p90 = scmp.ne.s32.totalorder %s78, %s79
    %p91 = scmp.eq.s32.totalorder %s15, 1
    %p92 = por %p90, %p91
    %p94 = scmp.ne.s32.totalorder %s79, %s93
    %p95 = scmp.eq.s32.totalorder %s15, 0
    %p96 = por %p94, %p95
    %s97 = ssub.s32 %s16, %s28
    %s98 = ssub.s32 %s17, %s24
    %s99 = sor.u32 %s97, %s98
    %p100 = scmp.eq.s32.totalorder %s99, 0
    %s102 = sadd.s32 %s101, 1
    %s103 = scalar_select %p100, %s101, %s102
    %p106 = pneg %p100
    %p107 = scmp.eq.s32.totalorder %s9, 1
    %p108 = por %p106, %p107
    %p109 = scmp.ne.s32.totalorder %s101, %s104
    %p110 = scmp.eq.s32.totalorder %s9, 0
    %p111 = por %p109, %p110
    %p112 = scmp.ne.s32.totalorder %s101, %s104
    %p113 = scmp.eq.s32.totalorder %s14, 1
    %p114 = por %p112, %p113
    %p115 = scmp.ne.s32.totalorder %s104, %s105
    %p116 = scmp.eq.s32.totalorder %s14, 0
    %p117 = por %p115, %p116
    %p118 = scmp.ne.s32.totalorder %s104, %s105
    %p119 = scmp.eq.s32.totalorder %s15, 1
    %p120 = por %p118, %p119
    %p122 = scmp.ne.s32.totalorder %s105, %s121
    %p123 = scmp.eq.s32.totalorder %s15, 0
    %p124 = por %p122, %p123
    %p125 = scmp.le.s32.totalorder 1, %s9
    %p126 = scmp.lt.s32.totalorder %s9, 3
    %p127 = pnand %p125, %p126
    %p128 = pneg %p127
    // Predicated region
    $region9: #{analyzed_conv2d.1} parent=5 // pred_check
      _
    $region10: #{analyzed_conv2d.1} parent=5 // pred_check_branch
      %130 = sbr.rel (%p127) target = $region12
    $region11: #{analyzed_conv2d.1} parent=5 // pred_region
      %s131 = ssub.s32 %s9, 1
      // Predicated region
      $region13: #{analyzed_conv2d.1} parent=11 // pred_check
        %p132 = pneg %p68
      $region14: #{analyzed_conv2d.1} parent=11 // pred_check_branch
        %134 = sbr.rel (%p132) target = $region16
      $region15: #{analyzed_conv2d.1} parent=11 // pred_region
        _
      $region16: #{analyzed_conv2d.1} parent=11 // pred_fallthru
        _
      // Predicated region
      $region17: #{analyzed_conv2d.1} parent=11 // pred_check
        %p135 = pneg %p89
      $region18: #{analyzed_conv2d.1} parent=11 // pred_check_branch
        %137 = sbr.rel (%p135) target = $region20
      $region19: #{analyzed_conv2d.1} parent=11 // pred_region
        _
      $region20: #{analyzed_conv2d.1} parent=11 // pred_fallthru
        _
    $region12: #{analyzed_conv2d.1} parent=5 // pred_fallthru
      _
    %p138 = scmp.lt.s32.totalorder %s9, 2
    // Predicated region
    $region21: #{analyzed_conv2d.1} parent=5 // pred_check
      %p139 = pneg %p138
    $region22: #{analyzed_conv2d.1} parent=5 // pred_check_branch
      %141 = sbr.rel (%p139) target = $region24
    $region23: #{analyzed_conv2d.1} parent=5 // pred_region
      // Predicated region
      $region25: #{analyzed_conv2d.1} parent=23 // pred_check
        %p142 = pneg %p41
      $region26: #{analyzed_conv2d.1} parent=23 // pred_check_branch
        %144 = sbr.rel (%p142) target = $region28
      $region27: #{analyzed_conv2d.1} parent=23 // pred_region
        %p145 = scmp.lt.s32.totalorder %s16, 1
        %s146 = scalar_select %p145, %s16, 1
        %s147 = smul.addr %s146, 54
        %s148 = smul.addr %s147, 4
        %s149 = scalar_lea.vmem %s0, %s148
      $region28: #{analyzed_conv2d.1} parent=23 // pred_fallthru
        _
    $region24: #{analyzed_conv2d.1} parent=5 // pred_fallthru
      _
    %p150 = scmp.le.s32.totalorder 1, %s9
    %p151 = scmp.lt.s32.totalorder %s9, 3
    %p152 = pnand %p150, %p151
    %p153 = pneg %p152
    // Predicated region
    $region29: #{analyzed_conv2d.1} parent=5 // pred_check
      _
    $region30: #{analyzed_conv2d.1} parent=5 // pred_check_branch
      %155 = sbr.rel (%p152) target = $region32
    $region31: #{analyzed_conv2d.1} parent=5 // pred_region
      %s156 = ssub.s32 %s9, 1
      %p157 = scmp.lt.s32.totalorder %s18, 1
      %s158 = scalar_select %p157, %s18, 1
      %s159 = smul.addr %s158, 54
      %s160 = smul.addr %s159, 4
      %s161 = scalar_lea.vmem %s0, %s160
      %p162 = pneg %p47
      %p163 = pneg %p44
      %p164 = pneg %p68
      %p165 = pneg %p65
      %p166 = pneg %p89
      %p167 = pneg %p86
      %p168 = pneg %p117
      %p169 = pneg %p114
      %p170 = scmp.lt.s32.totalorder %s18, 1
      %s171 = scalar_select %p170, %s18, 1
      %p172 = scmp.lt.s32.totalorder %s19, 0
      %s173 = scalar_select %p172, %s19, 0
      %s174 = smul.addr %s173, 2
      %s175 = smul.addr %s171, 2
      %s176 = sadd.s32 %s174, %s175
      %s177 = smul.addr %s176, 8
      %s178 = scalar_lea.vmem %s3, %s177
      %p179 = scmp.lt.s32.totalorder %s18, 1
      %s180 = scalar_select %p179, %s18, 1
      %s181 = smul.addr %s180, 54
      %s182 = smul.addr %s181, 4
      %s183 = scalar_lea.vmem %s0, %s182
      %p184 = scmp.lt.s32.totalorder %s18, 1
      %s185 = scalar_select %p184, %s18, 1
      %p186 = scmp.lt.s32.totalorder %s19, 0
      %s187 = scalar_select %p186, %s19, 0
      %s188 = smul.addr %s187, 2
      %s189 = smul.addr %s185, 2
      %s190 = sadd.s32 %s188, %s189
      %s191 = smul.addr %s190, 8
      %s192 = scalar_lea.vmem %s3, %s191
      %s194 = smul.u32 %s19, 16
      %s195 = smul.u32 %s194, 3
      %s196 = smul.addr %s195, 4
      %s197 = scalar_lea.vmem %s183, %s196
      %v198 = vld [vmem:[%s197] sm:$0xf]
      %v199 = vld [vmem:[%s197 + $0x4] sm:$0xf]
      %v200 = vld [vmem:[%s197 + $0x8] sm:$0x1]
      %v201 = vld [vmem:[%s197 + $0xc] sm:$0xf]
      %v202 = vld [vmem:[%s197 + $0x10] sm:$0xf]
      %v203 = vld [vmem:[%s197 + $0x14] sm:$0x1]
      %v204 = vld [vmem:[%s197 + $0x18] sm:$0xf]
      %v205 = vld [vmem:[%s197 + $0x1c] sm:$0xf]
      %v206 = vld [vmem:[%s197 + $0x20] sm:$0x1]
      %v207 = vld [vmem:[%s197 + $0x24] sm:$0xf]
      %v208 = vld [vmem:[%s197 + $0x28] sm:$0xf]
      %v209 = vld [vmem:[%s197 + $0x2c] sm:$0x1]
      %v210 = vld [vmem:[%s197 + $0x30] sm:$0xf]
      %v211 = vld [vmem:[%s197 + $0x34] sm:$0xf]
      %v212 = vld [vmem:[%s197 + $0x38] sm:$0x1]
      %v213 = vld [vmem:[%s197 + $0x3c] sm:$0xf]
      %v214 = vld [vmem:[%s197 + $0x40] sm:$0xf]
      %v215 = vld [vmem:[%s197 + $0x44] sm:$0x1]
      %v216 = vld [vmem:[%s197 + $0x48] sm:$0xf]
      %v217 = vld [vmem:[%s197 + $0x4c] sm:$0xf]
      %v218 = vld [vmem:[%s197 + $0x50] sm:$0x1]
      %v219 = vld [vmem:[%s197 + $0x54] sm:$0xf]
      %v220 = vld [vmem:[%s197 + $0x58] sm:$0xf]
      %v221 = vld [vmem:[%s197 + $0x5c] sm:$0x1]
      %v222 = vld [vmem:[%s197 + $0x60] sm:$0xf]
      %v223 = vld [vmem:[%s197 + $0x64] sm:$0xf]
      %v224 = vld [vmem:[%s197 + $0x68] sm:$0x1]
      %v225 = vld [vmem:[%s197 + $0x6c] sm:$0xf]
      %v226 = vld [vmem:[%s197 + $0x70] sm:$0xf]
      %v227 = vld [vmem:[%s197 + $0x74] sm:$0x1]
      %v228 = vld [vmem:[%s197 + $0x78] sm:$0xf]
      %v229 = vld [vmem:[%s197 + $0x7c] sm:$0xf]
      %v230 = vld [vmem:[%s197 + $0x80] sm:$0x1]
      %v231 = vld [vmem:[%s197 + $0x84] sm:$0xf]
      %v232 = vld [vmem:[%s197 + $0x88] sm:$0xf]
      %v233 = vld [vmem:[%s197 + $0x8c] sm:$0x1]
      %v234 = vld [vmem:[%s197 + $0x90] sm:$0xf]
      %v235 = vld [vmem:[%s197 + $0x94] sm:$0xf]
      %v236 = vld [vmem:[%s197 + $0x98] sm:$0x1]
      %v237 = vld [vmem:[%s197 + $0x9c] sm:$0xf]
      %v238 = vld [vmem:[%s197 + $0xa0] sm:$0xf]
      %v239 = vld [vmem:[%s197 + $0xa4] sm:$0x1]
      %v240 = vld [vmem:[%s197 + $0xa8] sm:$0xf]
      %v241 = vld [vmem:[%s197 + $0xac] sm:$0xf]
      %v242 = vld [vmem:[%s197 + $0xb0] sm:$0x1]
      %v243 = vld [vmem:[%s197 + $0xb4] sm:$0xf]
      %v244 = vld [vmem:[%s197 + $0xb8] sm:$0xf]
      %v245 = vld [vmem:[%s197 + $0xbc] sm:$0x1]
      %v246 = vld [vmem:[%s197 + $0xc0] sm:$0xf]
      %v247 = vld [vmem:[%s197 + $0xc4] sm:$0xf]
      %v248 = vld [vmem:[%s197 + $0xc8] sm:$0x1]
      %v249 = vld [vmem:[%s197 + $0xcc] sm:$0xf]
      %v250 = vld [vmem:[%s197 + $0xd0] sm:$0xf]
      %v251 = vld [vmem:[%s197 + $0xd4] sm:$0x1]
      %v284 = vunpack.c.l.b16 %v198
      %v285 = vunpack.c.l.b16 %v199
      %v286 = vunpack.c.l.b16 %v201
      %v287 = vunpack.c.l.b16 %v202
      %v288 = vunpack.c.l.b16 %v204
      %v289 = vunpack.c.l.b16 %v205
      %v290 = vunpack.c.l.b16 %v207
      %v291 = vunpack.c.l.b16 %v208
      %v292 = vunpack.c.l.b16 %v210
      %v293 = vunpack.c.l.b16 %v211
      %v294 = vunpack.c.l.b16 %v213
      %v295 = vunpack.c.l.b16 %v214
      %v296 = vunpack.c.l.b16 %v216
      %v297 = vunpack.c.l.b16 %v217
      %v298 = vunpack.c.l.b16 %v219
      %v299 = vunpack.c.l.b16 %v220
      %v300 = vunpack.c.l.b16 %v222
      %v301 = vunpack.c.l.b16 %v223
      %v302 = vunpack.c.l.b16 %v225
      %v303 = vunpack.c.l.b16 %v226
      %v304 = vunpack.c.l.b16 %v228
      %v305 = vunpack.c.l.b16 %v229
      %v306 = vunpack.c.l.b16 %v231
      %v307 = vunpack.c.l.b16 %v232
      %v308 = vunpack.c.l.b16 %v234
      %v309 = vunpack.c.l.b16 %v235
      %v310 = vunpack.c.l.b16 %v237
      %v311 = vunpack.c.l.b16 %v238
      %v312 = vunpack.c.l.b16 %v240
      %v313 = vunpack.c.l.b16 %v241
      %v314 = vunpack.c.l.b16 %v243
      %v315 = vunpack.c.l.b16 %v244
      %v316 = vpack.c.b16 %v285, %v284
      %v317 = vpack.c.b16 %v287, %v286
      %v318 = vpack.c.b16 %v289, %v288
      %v319 = vpack.c.b16 %v291, %v290
      %v320 = vpack.c.b16 %v293, %v292
      %v321 = vpack.c.b16 %v295, %v294
      %v322 = vpack.c.b16 %v297, %v296
      %v323 = vpack.c.b16 %v299, %v298
      %v324 = vpack.c.b16 %v301, %v300
      %v325 = vpack.c.b16 %v303, %v302
      %v326 = vpack.c.b16 %v305, %v304
      %v327 = vpack.c.b16 %v307, %v306
      %v328 = vpack.c.b16 %v309, %v308
      %v329 = vpack.c.b16 %v311, %v310
      %v330 = vpack.c.b16 %v313, %v312
      %v331 = vpack.c.b16 %v315, %v314
      %v348 = vunpack.c.l.b16 %v200
      %v349 = vunpack.c.l.b16 %v203
      %v350 = vunpack.c.l.b16 %v206
      %v351 = vunpack.c.l.b16 %v209
      %v352 = vunpack.c.l.b16 %v212
      %v353 = vunpack.c.l.b16 %v215
      %v354 = vunpack.c.l.b16 %v218
      %v355 = vunpack.c.l.b16 %v221
      %v356 = vunpack.c.l.b16 %v224
      %v357 = vunpack.c.l.b16 %v227
      %v358 = vunpack.c.l.b16 %v230
      %v359 = vunpack.c.l.b16 %v233
      %v360 = vunpack.c.l.b16 %v236
      %v361 = vunpack.c.l.b16 %v239
      %v362 = vunpack.c.l.b16 %v242
      %v363 = vunpack.c.l.b16 %v245
      %v364 = vpack.c.b16 %v348, %v348
      %v365 = vpack.c.b16 %v349, %v349
      %v366 = vpack.c.b16 %v350, %v350
      %v367 = vpack.c.b16 %v351, %v351
      %v368 = vpack.c.b16 %v352, %v352
      %v369 = vpack.c.b16 %v353, %v353
      %v370 = vpack.c.b16 %v354, %v354
      %v371 = vpack.c.b16 %v355, %v355
      %v372 = vpack.c.b16 %v356, %v356
      %v373 = vpack.c.b16 %v357, %v357
      %v374 = vpack.c.b16 %v358, %v358
      %v375 = vpack.c.b16 %v359, %v359
      %v376 = vpack.c.b16 %v360, %v360
      %v377 = vpack.c.b16 %v361, %v361
      %v378 = vpack.c.b16 %v362, %v362
      %v379 = vpack.c.b16 %v363, %v363
      %vm380 = vsmask.f32 7424
      %v382 = vshrl.u32 %v316, 16
      %v384 = vshll.u32 %v316, 16
      %v386 = vrot.slane %v384, 1
      %v387 = vor.u32 %v382, %v386
      %v389 = vshll.u32 %v364, 16
      %v391 = vrot.slane %v389, 1
      %v392 = vsel %vm380, %v387, %v391
      %v394 = vshrl.u32 %v317, 16
      %v396 = vshll.u32 %v317, 16
      %v398 = vrot.slane %v396, 1
      %v399 = vor.u32 %v394, %v398
      %v401 = vshll.u32 %v365, 16
      %v403 = vrot.slane %v401, 1
      %v404 = vsel %vm380, %v399, %v403
      %v406 = vshrl.u32 %v318, 16
      %v408 = vshll.u32 %v318, 16
      %v410 = vrot.slane %v408, 1
      %v411 = vor.u32 %v406, %v410
      %v413 = vshll.u32 %v366, 16
      %v415 = vrot.slane %v413, 1
      %v416 = vsel %vm380, %v411, %v415
      %v418 = vshrl.u32 %v319, 16
      %v420 = vshll.u32 %v319, 16
      %v422 = vrot.slane %v420, 1
      %v423 = vor.u32 %v418, %v422
      %v425 = vshll.u32 %v367, 16
      %v427 = vrot.slane %v425, 1
      %v428 = vsel %vm380, %v423, %v427
      %v430 = vshrl.u32 %v320, 16
      %v432 = vshll.u32 %v320, 16
      %v434 = vrot.slane %v432, 1
      %v435 = vor.u32 %v430, %v434
      %v437 = vshll.u32 %v368, 16
      %v439 = vrot.slane %v437, 1
      %v440 = vsel %vm380, %v435, %v439
      %v442 = vshrl.u32 %v321, 16
      %v444 = vshll.u32 %v321, 16
      %v446 = vrot.slane %v444, 1
      %v447 = vor.u32 %v442, %v446
      %v449 = vshll.u32 %v369, 16
      %v451 = vrot.slane %v449, 1
      %v452 = vsel %vm380, %v447, %v451
      %v454 = vshrl.u32 %v322, 16
      %v456 = vshll.u32 %v322, 16
      %v458 = vrot.slane %v456, 1
      %v459 = vor.u32 %v454, %v458
      %v461 = vshll.u32 %v370, 16
      %v463 = vrot.slane %v461, 1
      %v464 = vsel %vm380, %v459, %v463
      %v466 = vshrl.u32 %v323, 16
      %v468 = vshll.u32 %v323, 16
      %v470 = vrot.slane %v468, 1
      %v471 = vor.u32 %v466, %v470
      %v473 = vshll.u32 %v371, 16
      %v475 = vrot.slane %v473, 1
      %v476 = vsel %vm380, %v471, %v475
      %v478 = vshrl.u32 %v324, 16
      %v480 = vshll.u32 %v324, 16
      %v482 = vrot.slane %v480, 1
      %v483 = vor.u32 %v478, %v482
      %v485 = vshll.u32 %v372, 16
      %v487 = vrot.slane %v485, 1
      %v488 = vsel %vm380, %v483, %v487
      %v490 = vshrl.u32 %v325, 16
      %v492 = vshll.u32 %v325, 16
      %v494 = vrot.slane %v492, 1
      %v495 = vor.u32 %v490, %v494
      %v497 = vshll.u32 %v373, 16
      %v499 = vrot.slane %v497, 1
      %v500 = vsel %vm380, %v495, %v499
      %v502 = vshrl.u32 %v326, 16
      %v504 = vshll.u32 %v326, 16
      %v506 = vrot.slane %v504, 1
      %v507 = vor.u32 %v502, %v506
      %v509 = vshll.u32 %v374, 16
      %v511 = vrot.slane %v509, 1
      %v512 = vsel %vm380, %v507, %v511
      %v514 = vshrl.u32 %v327, 16
      %v516 = vshll.u32 %v327, 16
      %v518 = vrot.slane %v516, 1
      %v519 = vor.u32 %v514, %v518
      %v521 = vshll.u32 %v375, 16
      %v523 = vrot.slane %v521, 1
      %v524 = vsel %vm380, %v519, %v523
      %v526 = vshrl.u32 %v328, 16
      %v528 = vshll.u32 %v328, 16
      %v530 = vrot.slane %v528, 1
      %v531 = vor.u32 %v526, %v530
      %v533 = vshll.u32 %v376, 16
      %v535 = vrot.slane %v533, 1
      %v536 = vsel %vm380, %v531, %v535
      %v538 = vshrl.u32 %v329, 16
      %v540 = vshll.u32 %v329, 16
      %v542 = vrot.slane %v540, 1
      %v543 = vor.u32 %v538, %v542
      %v545 = vshll.u32 %v377, 16
      %v547 = vrot.slane %v545, 1
      %v548 = vsel %vm380, %v543, %v547
      %v550 = vshrl.u32 %v330, 16
      %v552 = vshll.u32 %v330, 16
      %v554 = vrot.slane %v552, 1
      %v555 = vor.u32 %v550, %v554
      %v557 = vshll.u32 %v378, 16
      %v559 = vrot.slane %v557, 1
      %v560 = vsel %vm380, %v555, %v559
      %v562 = vshrl.u32 %v331, 16
      %v564 = vshll.u32 %v331, 16
      %v566 = vrot.slane %v564, 1
      %v567 = vor.u32 %v562, %v566
      %v569 = vshll.u32 %v379, 16
      %v571 = vrot.slane %v569, 1
      %v572 = vsel %vm380, %v567, %v571
      %573 = vrot.lane.b32.xlu0 %v392, 4
      %v574 = vpop.permute.xlu0 %573
      %575 = vrot.lane.b32.xlu0 %v404, 4
      %v576 = vpop.permute.xlu0 %575
      %577 = vrot.lane.b32.xlu0 %v416, 4
      %v578 = vpop.permute.xlu0 %577
      %579 = vrot.lane.b32.xlu0 %v428, 4
      %v580 = vpop.permute.xlu0 %579
      %581 = vrot.lane.b32.xlu0 %v440, 4
      %v582 = vpop.permute.xlu0 %581
      %583 = vrot.lane.b32.xlu0 %v452, 4
      %v584 = vpop.permute.xlu0 %583
      %585 = vrot.lane.b32.xlu0 %v464, 4
      %v586 = vpop.permute.xlu0 %585
      %587 = vrot.lane.b32.xlu0 %v476, 4
      %v588 = vpop.permute.xlu0 %587
      %589 = vrot.lane.b32.xlu0 %v488, 4
      %v590 = vpop.permute.xlu0 %589
      %591 = vrot.lane.b32.xlu0 %v500, 4
      %v592 = vpop.permute.xlu0 %591
      %593 = vrot.lane.b32.xlu0 %v512, 4
      %v594 = vpop.permute.xlu0 %593
      %595 = vrot.lane.b32.xlu0 %v524, 4
      %v596 = vpop.permute.xlu0 %595
      %597 = vrot.lane.b32.xlu0 %v536, 4
      %v598 = vpop.permute.xlu0 %597
      %599 = vrot.lane.b32.xlu0 %v548, 4
      %v600 = vpop.permute.xlu0 %599
      %601 = vrot.lane.b32.xlu0 %v560, 4
      %v602 = vpop.permute.xlu0 %601
      %603 = vrot.lane.b32.xlu0 %v572, 4
      %v604 = vpop.permute.xlu0 %603
      %vm605 = vcmask 1046528
      %v606 = vrot.slane %v316, 1
      %v607 = vrot.slane %v364, 1
      %v608 = vsel %vm605, %v606, %v607
      %v609 = vrot.slane %v317, 1
      %v610 = vrot.slane %v365, 1
      %v611 = vsel %vm605, %v609, %v610
      %v612 = vrot.slane %v318, 1
      %v613 = vrot.slane %v366, 1
      %v614 = vsel %vm605, %v612, %v613
      %v615 = vrot.slane %v319, 1
      %v616 = vrot.slane %v367, 1
      %v617 = vsel %vm605, %v615, %v616
      %v618 = vrot.slane %v320, 1
      %v619 = vrot.slane %v368, 1
      %v620 = vsel %vm605, %v618, %v619
      %v621 = vrot.slane %v321, 1
      %v622 = vrot.slane %v369, 1
      %v623 = vsel %vm605, %v621, %v622
      %v624 = vrot.slane %v322, 1
      %v625 = vrot.slane %v370, 1
      %v626 = vsel %vm605, %v624, %v625
      %v627 = vrot.slane %v323, 1
      %v628 = vrot.slane %v371, 1
      %v629 = vsel %vm605, %v627, %v628
      %v630 = vrot.slane %v324, 1
      %v631 = vrot.slane %v372, 1
      %v632 = vsel %vm605, %v630, %v631
      %v633 = vrot.slane %v325, 1
      %v634 = vrot.slane %v373, 1
      %v635 = vsel %vm605, %v633, %v634
      %v636 = vrot.slane %v326, 1
      %v637 = vrot.slane %v374, 1
      %v638 = vsel %vm605, %v636, %v637
      %v639 = vrot.slane %v327, 1
      %v640 = vrot.slane %v375, 1
      %v641 = vsel %vm605, %v639, %v640
      %v642 = vrot.slane %v328, 1
      %v643 = vrot.slane %v376, 1
      %v644 = vsel %vm605, %v642, %v643
      %v645 = vrot.slane %v329, 1
      %v646 = vrot.slane %v377, 1
      %v647 = vsel %vm605, %v645, %v646
      %v648 = vrot.slane %v330, 1
      %v649 = vrot.slane %v378, 1
      %v650 = vsel %vm605, %v648, %v649
      %v651 = vrot.slane %v331, 1
      %v652 = vrot.slane %v379, 1
      %v653 = vsel %vm605, %v651, %v652
      %654 = vrot.lane.b32.xlu0 %v608, 8
      %v655 = vpop.permute.xlu0 %654
      %656 = vrot.lane.b32.xlu0 %v611, 8
      %v657 = vpop.permute.xlu0 %656
      %658 = vrot.lane.b32.xlu0 %v614, 8
      %v659 = vpop.permute.xlu0 %658
      %660 = vrot.lane.b32.xlu0 %v617, 8
      %v661 = vpop.permute.xlu0 %660
      %662 = vrot.lane.b32.xlu0 %v620, 8
      %v663 = vpop.permute.xlu0 %662
      %664 = vrot.lane.b32.xlu0 %v623, 8
      %v665 = vpop.permute.xlu0 %664
      %666 = vrot.lane.b32.xlu0 %v626, 8
      %v667 = vpop.permute.xlu0 %666
      %668 = vrot.lane.b32.xlu0 %v629, 8
      %v669 = vpop.permute.xlu0 %668
      %670 = vrot.lane.b32.xlu0 %v632, 8
      %v671 = vpop.permute.xlu0 %670
      %672 = vrot.lane.b32.xlu0 %v635, 8
      %v673 = vpop.permute.xlu0 %672
      %674 = vrot.lane.b32.xlu0 %v638, 8
      %v675 = vpop.permute.xlu0 %674
      %676 = vrot.lane.b32.xlu0 %v641, 8
      %v677 = vpop.permute.xlu0 %676
      %678 = vrot.lane.b32.xlu0 %v644, 8
      %v679 = vpop.permute.xlu0 %678
      %680 = vrot.lane.b32.xlu0 %v647, 8
      %v681 = vpop.permute.xlu0 %680
      %682 = vrot.lane.b32.xlu0 %v650, 8
      %v683 = vpop.permute.xlu0 %682
      %684 = vrot.lane.b32.xlu0 %v653, 8
      %v685 = vpop.permute.xlu0 %684
      %v688 = vunpack.c.l.b16 %v246
      %v689 = vunpack.c.l.b16 %v247
      %v690 = vpack.c.b16 %v689, %v688
      %691 = vrot.lane.b32.xlu0 %v317, 12
      %v692 = vpop.permute.xlu0 %691
      %693 = vrot.lane.b32.xlu0 %v318, 12
      %v694 = vpop.permute.xlu0 %693
      %695 = vrot.lane.b32.xlu0 %v319, 12
      %v696 = vpop.permute.xlu0 %695
      %697 = vrot.lane.b32.xlu0 %v320, 12
      %v698 = vpop.permute.xlu0 %697
      %699 = vrot.lane.b32.xlu0 %v321, 12
      %v700 = vpop.permute.xlu0 %699
      %701 = vrot.lane.b32.xlu0 %v322, 12
      %v702 = vpop.permute.xlu0 %701
      %703 = vrot.lane.b32.xlu0 %v323, 12
      %v704 = vpop.permute.xlu0 %703
      %705 = vrot.lane.b32.xlu0 %v324, 12
      %v706 = vpop.permute.xlu0 %705
      %707 = vrot.lane.b32.xlu0 %v325, 12
      %v708 = vpop.permute.xlu0 %707
      %709 = vrot.lane.b32.xlu0 %v326, 12
      %v710 = vpop.permute.xlu0 %709
      %711 = vrot.lane.b32.xlu0 %v327, 12
      %v712 = vpop.permute.xlu0 %711
      %713 = vrot.lane.b32.xlu0 %v328, 12
      %v714 = vpop.permute.xlu0 %713
      %715 = vrot.lane.b32.xlu0 %v329, 12
      %v716 = vpop.permute.xlu0 %715
      %717 = vrot.lane.b32.xlu0 %v330, 12
      %v718 = vpop.permute.xlu0 %717
      %719 = vrot.lane.b32.xlu0 %v331, 12
      %v720 = vpop.permute.xlu0 %719
      %721 = vrot.lane.b32.xlu0 %v690, 12
      %v722 = vpop.permute.xlu0 %721
      %v724 = vunpack.c.l.b16 %v248
      %v725 = vpack.c.b16 %v724, %v724
      %v727 = vshrl.u32 %v690, 16
      %v729 = vshll.u32 %v690, 16
      %v731 = vrot.slane %v729, 1
      %v732 = vor.u32 %v727, %v731
      %v734 = vshll.u32 %v725, 16
      %v736 = vrot.slane %v734, 1
      %v737 = vsel %vm380, %v732, %v736
      %738 = vrot.lane.b32.xlu0 %v404, 16
      %v739 = vpop.permute.xlu0 %738
      %740 = vrot.lane.b32.xlu0 %v416, 16
      %v741 = vpop.permute.xlu0 %740
      %742 = vrot.lane.b32.xlu0 %v428, 16
      %v743 = vpop.permute.xlu0 %742
      %744 = vrot.lane.b32.xlu0 %v440, 16
      %v745 = vpop.permute.xlu0 %744
      %746 = vrot.lane.b32.xlu0 %v452, 16
      %v747 = vpop.permute.xlu0 %746
      %748 = vrot.lane.b32.xlu0 %v464, 16
      %v749 = vpop.permute.xlu0 %748
      %750 = vrot.lane.b32.xlu0 %v476, 16
      %v751 = vpop.permute.xlu0 %750
      %752 = vrot.lane.b32.xlu0 %v488, 16
      %v753 = vpop.permute.xlu0 %752
      %754 = vrot.lane.b32.xlu0 %v500, 16
      %v755 = vpop.permute.xlu0 %754
      %756 = vrot.lane.b32.xlu0 %v512, 16
      %v757 = vpop.permute.xlu0 %756
      %758 = vrot.lane.b32.xlu0 %v524, 16
      %v759 = vpop.permute.xlu0 %758
      %760 = vrot.lane.b32.xlu0 %v536, 16
      %v761 = vpop.permute.xlu0 %760
      %762 = vrot.lane.b32.xlu0 %v548, 16
      %v763 = vpop.permute.xlu0 %762
      %764 = vrot.lane.b32.xlu0 %v560, 16
      %v765 = vpop.permute.xlu0 %764
      %766 = vrot.lane.b32.xlu0 %v572, 16
      %v767 = vpop.permute.xlu0 %766
      %768 = vrot.lane.b32.xlu0 %v737, 16
      %v769 = vpop.permute.xlu0 %768
      %v770 = vrot.slane %v690, 1
      %v771 = vrot.slane %v725, 1
      %v772 = vsel %vm605, %v770, %v771
      %773 = vrot.lane.b32.xlu0 %v611, 20
      %v774 = vpop.permute.xlu0 %773
      %775 = vrot.lane.b32.xlu0 %v614, 20
      %v776 = vpop.permute.xlu0 %775
      %777 = vrot.lane.b32.xlu0 %v617, 20
      %v778 = vpop.permute.xlu0 %777
      %779 = vrot.lane.b32.xlu0 %v620, 20
      %v780 = vpop.permute.xlu0 %779
      %781 = vrot.lane.b32.xlu0 %v623, 20
      %v782 = vpop.permute.xlu0 %781
      %783 = vrot.lane.b32.xlu0 %v626, 20
      %v784 = vpop.permute.xlu0 %783
      %785 = vrot.lane.b32.xlu0 %v629, 20
      %v786 = vpop.permute.xlu0 %785
      %787 = vrot.lane.b32.xlu0 %v632, 20
      %v788 = vpop.permute.xlu0 %787
      %789 = vrot.lane.b32.xlu0 %v635, 20
      %v790 = vpop.permute.xlu0 %789
      %791 = vrot.lane.b32.xlu0 %v638, 20
      %v792 = vpop.permute.xlu0 %791
      %793 = vrot.lane.b32.xlu0 %v641, 20
      %v794 = vpop.permute.xlu0 %793
      %795 = vrot.lane.b32.xlu0 %v644, 20
      %v796 = vpop.permute.xlu0 %795
      %797 = vrot.lane.b32.xlu0 %v647, 20
      %v798 = vpop.permute.xlu0 %797
      %799 = vrot.lane.b32.xlu0 %v650, 20
      %v800 = vpop.permute.xlu0 %799
      %801 = vrot.lane.b32.xlu0 %v653, 20
      %v802 = vpop.permute.xlu0 %801
      %803 = vrot.lane.b32.xlu0 %v772, 20
      %v804 = vpop.permute.xlu0 %803
      %v807 = vunpack.c.l.b16 %v249
      %v808 = vunpack.c.l.b16 %v250
      %v809 = vpack.c.b16 %v808, %v807
      %810 = vrot.lane.b32.xlu0 %v318, 24
      %v811 = vpop.permute.xlu0 %810
      %812 = vrot.lane.b32.xlu0 %v319, 24
      %v813 = vpop.permute.xlu0 %812
      %814 = vrot.lane.b32.xlu0 %v320, 24
      %v815 = vpop.permute.xlu0 %814
      %816 = vrot.lane.b32.xlu0 %v321, 24
      %v817 = vpop.permute.xlu0 %816
      %818 = vrot.lane.b32.xlu0 %v322, 24
      %v819 = vpop.permute.xlu0 %818
      %820 = vrot.lane.b32.xlu0 %v323, 24
      %v821 = vpop.permute.xlu0 %820
      %822 = vrot.lane.b32.xlu0 %v324, 24
      %v823 = vpop.permute.xlu0 %822
      %824 = vrot.lane.b32.xlu0 %v325, 24
      %v825 = vpop.permute.xlu0 %824
      %826 = vrot.lane.b32.xlu0 %v326, 24
      %v827 = vpop.permute.xlu0 %826
      %828 = vrot.lane.b32.xlu0 %v327, 24
      %v829 = vpop.permute.xlu0 %828
      %830 = vrot.lane.b32.xlu0 %v328, 24
      %v831 = vpop.permute.xlu0 %830
      %832 = vrot.lane.b32.xlu0 %v329, 24
      %v833 = vpop.permute.xlu0 %832
      %834 = vrot.lane.b32.xlu0 %v330, 24
      %v835 = vpop.permute.xlu0 %834
      %836 = vrot.lane.b32.xlu0 %v331, 24
      %v837 = vpop.permute.xlu0 %836
      %838 = vrot.lane.b32.xlu0 %v690, 24
      %v839 = vpop.permute.xlu0 %838
      %840 = vrot.lane.b32.xlu0 %v809, 24
      %v841 = vpop.permute.xlu0 %840
      %v843 = vunpack.c.l.b16 %v251
      %v844 = vpack.c.b16 %v843, %v843
      %v846 = vshrl.u32 %v809, 16
      %v848 = vshll.u32 %v809, 16
      %v850 = vrot.slane %v848, 1
      %v851 = vor.u32 %v846, %v850
      %v853 = vshll.u32 %v844, 16
      %v855 = vrot.slane %v853, 1
      %v856 = vsel %vm380, %v851, %v855
      %857 = vrot.lane.b32.xlu0 %v416, 28
      %v858 = vpop.permute.xlu0 %857
      %859 = vrot.lane.b32.xlu0 %v428, 28
      %v860 = vpop.permute.xlu0 %859
      %861 = vrot.lane.b32.xlu0 %v440, 28
      %v862 = vpop.permute.xlu0 %861
      %863 = vrot.lane.b32.xlu0 %v452, 28
      %v864 = vpop.permute.xlu0 %863
      %865 = vrot.lane.b32.xlu0 %v464, 28
      %v866 = vpop.permute.xlu0 %865
      %867 = vrot.lane.b32.xlu0 %v476, 28
      %v868 = vpop.permute.xlu0 %867
      %869 = vrot.lane.b32.xlu0 %v488, 28
      %v870 = vpop.permute.xlu0 %869
      %871 = vrot.lane.b32.xlu0 %v500, 28
      %v872 = vpop.permute.xlu0 %871
      %873 = vrot.lane.b32.xlu0 %v512, 28
      %v874 = vpop.permute.xlu0 %873
      %875 = vrot.lane.b32.xlu0 %v524, 28
      %v876 = vpop.permute.xlu0 %875
      %877 = vrot.lane.b32.xlu0 %v536, 28
      %v878 = vpop.permute.xlu0 %877
      %879 = vrot.lane.b32.xlu0 %v548, 28
      %v880 = vpop.permute.xlu0 %879
      %881 = vrot.lane.b32.xlu0 %v560, 28
      %v882 = vpop.permute.xlu0 %881
      %883 = vrot.lane.b32.xlu0 %v572, 28
      %v884 = vpop.permute.xlu0 %883
      %885 = vrot.lane.b32.xlu0 %v737, 28
      %v886 = vpop.permute.xlu0 %885
      %887 = vrot.lane.b32.xlu0 %v856, 28
      %v888 = vpop.permute.xlu0 %887
      %v889 = vrot.slane %v809, 1
      %v890 = vrot.slane %v844, 1
      %v891 = vsel %vm605, %v889, %v890
      %892 = vrot.lane.b32.xlu0 %v614, 32
      %v893 = vpop.permute.xlu0 %892
      %894 = vrot.lane.b32.xlu0 %v617, 32
      %v895 = vpop.permute.xlu0 %894
      %896 = vrot.lane.b32.xlu0 %v620, 32
      %v897 = vpop.permute.xlu0 %896
      %898 = vrot.lane.b32.xlu0 %v623, 32
      %v899 = vpop.permute.xlu0 %898
      %900 = vrot.lane.b32.xlu0 %v626, 32
      %v901 = vpop.permute.xlu0 %900
      %902 = vrot.lane.b32.xlu0 %v629, 32
      %v903 = vpop.permute.xlu0 %902
      %904 = vrot.lane.b32.xlu0 %v632, 32
      %v905 = vpop.permute.xlu0 %904
      %906 = vrot.lane.b32.xlu0 %v635, 32
      %v907 = vpop.permute.xlu0 %906
      %908 = vrot.lane.b32.xlu0 %v638, 32
      %v909 = vpop.permute.xlu0 %908
      %910 = vrot.lane.b32.xlu0 %v641, 32
      %v911 = vpop.permute.xlu0 %910
      %912 = vrot.lane.b32.xlu0 %v644, 32
      %v913 = vpop.permute.xlu0 %912
      %914 = vrot.lane.b32.xlu0 %v647, 32
      %v915 = vpop.permute.xlu0 %914
      %916 = vrot.lane.b32.xlu0 %v650, 32
      %v917 = vpop.permute.xlu0 %916
      %918 = vrot.lane.b32.xlu0 %v653, 32
      %v919 = vpop.permute.xlu0 %918
      %920 = vrot.lane.b32.xlu0 %v772, 32
      %v921 = vpop.permute.xlu0 %920
      %922 = vrot.lane.b32.xlu0 %v891, 32
      %v923 = vpop.permute.xlu0 %922
      %vm924 = vcmask 31744
      %v926 = vsel %vm924, %v316, %v574
      %v928 = vsel %vm924, %v317, %v576
      %v930 = vsel %vm924, %v318, %v578
      %v932 = vsel %vm924, %v319, %v580
      %v934 = vsel %vm924, %v320, %v582
      %v936 = vsel %vm924, %v321, %v584
      %v938 = vsel %vm924, %v322, %v586
      %v940 = vsel %vm924, %v323, %v588
      %v942 = vsel %vm924, %v324, %v590
      %v944 = vsel %vm924, %v325, %v592
      %v946 = vsel %vm924, %v326, %v594
      %v948 = vsel %vm924, %v327, %v596
      %v950 = vsel %vm924, %v328, %v598
      %v952 = vsel %vm924, %v329, %v600
      %v954 = vsel %vm924, %v330, %v602
      %v956 = vsel %vm924, %v331, %v604
      %vm957 = vcmask 64512
      %v959 = vsel %vm957, %v926, %v655
      %v961 = vsel %vm957, %v928, %v657
      %v963 = vsel %vm957, %v930, %v659
      %v965 = vsel %vm957, %v932, %v661
      %v967 = vsel %vm957, %v934, %v663
      %v969 = vsel %vm957, %v936, %v665
      %v971 = vsel %vm957, %v938, %v667
      %v973 = vsel %vm957, %v940, %v669
      %v975 = vsel %vm957, %v942, %v671
      %v977 = vsel %vm957, %v944, %v673
      %v979 = vsel %vm957, %v946, %v675
      %v981 = vsel %vm957, %v948, %v677
      %v983 = vsel %vm957, %v950, %v679
      %v985 = vsel %vm957, %v952, %v681
      %v987 = vsel %vm957, %v954, %v683
      %v989 = vsel %vm957, %v956, %v685
      %vm990 = vcmask 97280
      %v992 = vsel %vm990, %v959, %v692
      %v994 = vsel %vm990, %v961, %v694
      %v996 = vsel %vm990, %v963, %v696
      %v998 = vsel %vm990, %v965, %v698
      %v1000 = vsel %vm990, %v967, %v700
      %v1002 = vsel %vm990, %v969, %v702
      %v1004 = vsel %vm990, %v971, %v704
      %v1006 = vsel %vm990, %v973, %v706
      %v1008 = vsel %vm990, %v975, %v708
      %v1010 = vsel %vm990, %v977, %v710
      %v1012 = vsel %vm990, %v979, %v712
      %v1014 = vsel %vm990, %v981, %v714
      %v1016 = vsel %vm990, %v983, %v716
      %v1018 = vsel %vm990, %v985, %v718
      %v1020 = vsel %vm990, %v987, %v720
      %v1022 = vsel %vm990, %v989, %v722
      %vm1023 = vcmask 130048
      %v1025 = vsel %vm1023, %v992, %v739
      %v1027 = vsel %vm1023, %v994, %v741
      %v1029 = vsel %vm1023, %v996, %v743
      %v1031 = vsel %vm1023, %v998, %v745
      %v1033 = vsel %vm1023, %v1000, %v747
      %v1035 = vsel %vm1023, %v1002, %v749
      %v1037 = vsel %vm1023, %v1004, %v751
      %v1039 = vsel %vm1023, %v1006, %v753
      %v1041 = vsel %vm1023, %v1008, %v755
      %v1043 = vsel %vm1023, %v1010, %v757
      %v1045 = vsel %vm1023, %v1012, %v759
      %v1047 = vsel %vm1023, %v1014, %v761
      %v1049 = vsel %vm1023, %v1016, %v763
      %v1051 = vsel %vm1023, %v1018, %v765
      %v1053 = vsel %vm1023, %v1020, %v767
      %v1055 = vsel %vm1023, %v1022, %v769
      %vm1056 = vcmask 162816
      %v1058 = vsel %vm1056, %v1025, %v774
      %v1060 = vsel %vm1056, %v1027, %v776
      %v1062 = vsel %vm1056, %v1029, %v778
      %v1064 = vsel %vm1056, %v1031, %v780
      %v1066 = vsel %vm1056, %v1033, %v782
      %v1068 = vsel %vm1056, %v1035, %v784
      %v1070 = vsel %vm1056, %v1037, %v786
      %v1072 = vsel %vm1056, %v1039, %v788
      %v1074 = vsel %vm1056, %v1041, %v790
      %v1076 = vsel %vm1056, %v1043, %v792
      %v1078 = vsel %vm1056, %v1045, %v794
      %v1080 = vsel %vm1056, %v1047, %v796
      %v1082 = vsel %vm1056, %v1049, %v798
      %v1084 = vsel %vm1056, %v1051, %v800
      %v1086 = vsel %vm1056, %v1053, %v802
      %v1088 = vsel %vm1056, %v1055, %v804
      %vm1089 = vcmask 195584
      %v1091 = vsel %vm1089, %v1058, %v811
      %v1093 = vsel %vm1089, %v1060, %v813
      %v1095 = vsel %vm1089, %v1062, %v815
      %v1097 = vsel %vm1089, %v1064, %v817
      %v1099 = vsel %vm1089, %v1066, %v819
      %v1101 = vsel %vm1089, %v1068, %v821
      %v1103 = vsel %vm1089, %v1070, %v823
      %v1105 = vsel %vm1089, %v1072, %v825
      %v1107 = vsel %vm1089, %v1074, %v827
      %v1109 = vsel %vm1089, %v1076, %v829
      %v1111 = vsel %vm1089, %v1078, %v831
      %v1113 = vsel %vm1089, %v1080, %v833
      %v1115 = vsel %vm1089, %v1082, %v835
      %v1117 = vsel %vm1089, %v1084, %v837
      %v1119 = vsel %vm1089, %v1086, %v839
      %v1121 = vsel %vm1089, %v1088, %v841
      %vm1122 = vcmask 228352
      %v1124 = vsel %vm1122, %v1091, %v858
      %v1126 = vsel %vm1122, %v1093, %v860
      %v1128 = vsel %vm1122, %v1095, %v862
      %v1130 = vsel %vm1122, %v1097, %v864
      %v1132 = vsel %vm1122, %v1099, %v866
      %v1134 = vsel %vm1122, %v1101, %v868
      %v1136 = vsel %vm1122, %v1103, %v870
      %v1138 = vsel %vm1122, %v1105, %v872
      %v1140 = vsel %vm1122, %v1107, %v874
      %v1142 = vsel %vm1122, %v1109, %v876
      %v1144 = vsel %vm1122, %v1111, %v878
      %v1146 = vsel %vm1122, %v1113, %v880
      %v1148 = vsel %vm1122, %v1115, %v882
      %v1150 = vsel %vm1122, %v1117, %v884
      %v1152 = vsel %vm1122, %v1119, %v886
      %v1154 = vsel %vm1122, %v1121, %v888
      %vm1155 = vcmask 261120
      %v1157 = vsel %vm1155, %v1124, %v893
      %v1159 = vsel %vm1155, %v1126, %v895
      %v1161 = vsel %vm1155, %v1128, %v897
      %v1163 = vsel %vm1155, %v1130, %v899
      %v1165 = vsel %vm1155, %v1132, %v901
      %v1167 = vsel %vm1155, %v1134, %v903
      %v1169 = vsel %vm1155, %v1136, %v905
      %v1171 = vsel %vm1155, %v1138, %v907
      %v1173 = vsel %vm1155, %v1140, %v909
      %v1175 = vsel %vm1155, %v1142, %v911
      %v1177 = vsel %vm1155, %v1144, %v913
      %v1179 = vsel %vm1155, %v1146, %v915
      %v1181 = vsel %vm1155, %v1148, %v917
      %v1183 = vsel %vm1155, %v1150, %v919
      %v1185 = vsel %vm1155, %v1152, %v921
      %v1187 = vsel %vm1155, %v1154, %v923
      %v1188 = vld [vmem:[%s1] sm:$0xf]
      %v1189 = vld [vmem:[%s1 + $0x4] sm:$0xf]
      %v1190 = vld [vmem:[%s1 + $0x8] sm:$0xf]
      %v1191 = vld [vmem:[%s1 + $0xc] sm:$0xf]
      %v1192 = vld [vmem:[%s1 + $0x10] sm:$0x3]
      %v1193 = vld [vmem:[%s2] sm:$0x1]
      %v1195 = vlaneseq
      %v1196 = vshrl.u32 %v1195, 7
      %v1197 = vsub.s32 0, %v1196
      %v1198 = vrot.slane %v1193, %v1197
      %v1205 = vunpack.c.l.b16 %v1188
      %v1206 = vunpack.c.l.b16 %v1189
      %v1207 = vunpack.c.l.b16 %v1190
      %v1208 = vunpack.c.l.b16 %v1191
      %v1209 = vunpack.c.l.b16 %v1192
      %v1210 = vpack.c.b16 %v1206, %v1205
      %v1211 = vpack.c.b16 %v1208, %v1207
      %v1212 = vpack.c.b16 %v1209, %v1209
      %vm1215 = vcmask 293888
      %v1216 = vsel %vm1215, %v1157, 0
      %v1218 = vsel %vm1215, %v1159, 0
      %v1220 = vsel %vm1215, %v1161, 0
      %v1222 = vsel %vm1215, %v1163, 0
      %v1224 = vsel %vm1215, %v1165, 0
      %v1226 = vsel %vm1215, %v1167, 0
      %v1228 = vsel %vm1215, %v1169, 0
      %v1230 = vsel %vm1215, %v1171, 0
      %v1232 = vsel %vm1215, %v1173, 0
      %v1234 = vsel %vm1215, %v1175, 0
      %v1236 = vsel %vm1215, %v1177, 0
      %v1238 = vsel %vm1215, %v1179, 0
      %v1240 = vsel %vm1215, %v1181, 0
      %v1242 = vsel %vm1215, %v1183, 0
      %v1244 = vsel %vm1215, %v1185, 0
      %v1246 = vsel %vm1215, %v1187, 0
      %vm1248 = vcmask 1041408
      %v1250 = vsel %vm1248, %v1212, 0
      %1252 = vmatprep.subr.bf16.mxu0 0
      %1253 = vmatpush1.bf16.msra.mxu0 0
      %1254 = vmatprep.subr.bf16.mxu0 0
      %1255 = vmatpush1.bf16.msra.mxu0 0
      %1256 = vmatprep.subr.bf16.mxu0 0
      %1257 = vmatpush1.bf16.msra.mxu0 0
      %1258 = vmatprep.subr.bf16.mxu0 0
      %1259 = vmatpush1.bf16.msra.mxu0 0
      %1260 = vmatprep.subr.bf16.mxu0 0
      %1261 = vmatpush1.bf16.msra.mxu0 0
      %1262 = vmatprep.subr.bf16.mxu0 0
      %1263 = vmatpush1.bf16.msra.mxu0 %v1250
      %1264 = vmatprep.subr.bf16.mxu0 0
      %1265 = vmatpush1.bf16.msra.mxu0 %v1211
      %1266 = vmatprep.subr.bf16.mxu0 0
      %1267 = vmatpush1.bf16.msra.mxu0 %v1210
      %1268 = vmatprep.subr.bf16.mxu0 0
      %1269 = vmatpush2.bf16.msra.mxu0 0
      %1270 = vmatprep.subr.bf16.mxu0 0
      %1271 = vmatpush2.bf16.msra.mxu0 0
      %1272 = vmatprep.subr.bf16.mxu0 0
      %1273 = vmatpush2.bf16.msra.mxu0 0
      %1274 = vmatprep.subr.bf16.mxu0 0
      %1275 = vmatpush2.bf16.msra.mxu0 0
      %1276 = vmatprep.subr.bf16.mxu0 0
      %1277 = vmatpush2.bf16.msra.mxu0 0
      %1278 = vmatprep.subr.bf16.mxu0 0
      %1279 = vmatpush2.bf16.msra.mxu0 0
      %1280 = vmatprep.subr.bf16.mxu0 0
      %1281 = vmatpush2.bf16.msra.mxu0 0
      %1282 = vmatprep.subr.bf16.mxu0 0
      %1283 = vmatpush2.bf16.msra.mxu0 0
      %1284 = vmatprep.mubr.bf16.mxu0 0
      %1285 = vmatmul.mubr.bf16.gmra.mxu0 %v1216
      %v1286 = vpop.f32.mrf.mxu0
      %v1287 = vadd.f32 %v1198, %v1286
      %v1288 = vpop.f32.mrf.mxu0
      %v1289 = vpop.f32.mrf.mxu0
      %v1290 = vadd.f32 %v1198, %v1289
      %v1291 = vpop.f32.mrf.mxu0
      %1292 = vmatprep.mubr.bf16.mxu0 0
      %1293 = vmatmul.mubr.bf16.gmra.mxu0 %v1218
      %v1294 = vpop.f32.mrf.mxu0
      %v1295 = vadd.f32 %v1198, %v1294
      %v1296 = vpop.f32.mrf.mxu0
      %v1297 = vpop.f32.mrf.mxu0
      %v1298 = vadd.f32 %v1198, %v1297
      %v1299 = vpop.f32.mrf.mxu0
      %1300 = vmatprep.mubr.bf16.mxu0 0
      %1301 = vmatmul.mubr.bf16.gmra.mxu0 %v1220
      %v1302 = vpop.f32.mrf.mxu0
      %v1303 = vadd.f32 %v1198, %v1302
      %v1304 = vpop.f32.mrf.mxu0
      %v1305 = vpop.f32.mrf.mxu0
      %v1306 = vadd.f32 %v1198, %v1305
      %v1307 = vpop.f32.mrf.mxu0
      %1308 = vmatprep.mubr.bf16.mxu0 0
      %1309 = vmatmul.mubr.bf16.gmra.mxu0 %v1222
      %v1310 = vpop.f32.mrf.mxu0
      %v1311 = vadd.f32 %v1198, %v1310
      %v1312 = vpop.f32.mrf.mxu0
      %v1313 = vpop.f32.mrf.mxu0
      %v1314 = vadd.f32 %v1198, %v1313
      %v1315 = vpop.f32.mrf.mxu0
      %1316 = vmatprep.mubr.bf16.mxu0 0
      %1317 = vmatmul.mubr.bf16.gmra.mxu0 %v1224
      %v1318 = vpop.f32.mrf.mxu0
      %v1319 = vadd.f32 %v1198, %v1318
      %v1320 = vpop.f32.mrf.mxu0
      %v1321 = vpop.f32.mrf.mxu0
      %v1322 = vadd.f32 %v1198, %v1321
      %v1323 = vpop.f32.mrf.mxu0
      %1324 = vmatprep.mubr.bf16.mxu0 0
      %1325 = vmatmul.mubr.bf16.gmra.mxu0 %v1226
      %v1326 = vpop.f32.mrf.mxu0
      %v1327 = vadd.f32 %v1198, %v1326
      %v1328 = vpop.f32.mrf.mxu0
      %v1329 = vpop.f32.mrf.mxu0
      %v1330 = vadd.f32 %v1198, %v1329
      %v1331 = vpop.f32.mrf.mxu0
      %1332 = vmatprep.mubr.bf16.mxu0 0
      %1333 = vmatmul.mubr.bf16.gmra.mxu0 %v1228
      %v1334 = vpop.f32.mrf.mxu0
      %v1335 = vadd.f32 %v1198, %v1334
      %v1336 = vpop.f32.mrf.mxu0
      %v1337 = vpop.f32.mrf.mxu0
      %v1338 = vadd.f32 %v1198, %v1337
      %v1339 = vpop.f32.mrf.mxu0
      %1340 = vmatprep.mubr.bf16.mxu0 0
      %1341 = vmatmul.mubr.bf16.gmra.mxu0 %v1230
      %v1342 = vpop.f32.mrf.mxu0
      %v1343 = vadd.f32 %v1198, %v1342
      %v1344 = vpop.f32.mrf.mxu0
      %v1345 = vpop.f32.mrf.mxu0
      %v1346 = vadd.f32 %v1198, %v1345
      %v1347 = vpop.f32.mrf.mxu0
      %1348 = vmatprep.mubr.bf16.mxu0 0
      %1349 = vmatmul.mubr.bf16.gmra.mxu0 %v1232
      %v1350 = vpop.f32.mrf.mxu0
      %v1351 = vadd.f32 %v1198, %v1350
      %v1352 = vpop.f32.mrf.mxu0
      %v1353 = vpop.f32.mrf.mxu0
      %v1354 = vadd.f32 %v1198, %v1353
      %v1355 = vpop.f32.mrf.mxu0
      %1356 = vmatprep.mubr.bf16.mxu0 0
      %1357 = vmatmul.mubr.bf16.gmra.mxu0 %v1234
      %v1358 = vpop.f32.mrf.mxu0
      %v1359 = vadd.f32 %v1198, %v1358
      %v1360 = vpop.f32.mrf.mxu0
      %v1361 = vpop.f32.mrf.mxu0
      %v1362 = vadd.f32 %v1198, %v1361
      %v1363 = vpop.f32.mrf.mxu0
      %1364 = vmatprep.mubr.bf16.mxu0 0
      %1365 = vmatmul.mubr.bf16.gmra.mxu0 %v1236
      %v1366 = vpop.f32.mrf.mxu0
      %v1367 = vadd.f32 %v1198, %v1366
      %v1368 = vpop.f32.mrf.mxu0
      %v1369 = vpop.f32.mrf.mxu0
      %v1370 = vadd.f32 %v1198, %v1369
      %v1371 = vpop.f32.mrf.mxu0
      %1372 = vmatprep.mubr.bf16.mxu0 0
      %1373 = vmatmul.mubr.bf16.gmra.mxu0 %v1238
      %v1374 = vpop.f32.mrf.mxu0
      %v1375 = vadd.f32 %v1198, %v1374
      %v1376 = vpop.f32.mrf.mxu0
      %v1377 = vpop.f32.mrf.mxu0
      %v1378 = vadd.f32 %v1198, %v1377
      %v1379 = vpop.f32.mrf.mxu0
      %1380 = vmatprep.mubr.bf16.mxu0 0
      %1381 = vmatmul.mubr.bf16.gmra.mxu0 %v1240
      %v1382 = vpop.f32.mrf.mxu0
      %v1383 = vadd.f32 %v1198, %v1382
      %v1384 = vpop.f32.mrf.mxu0
      %v1385 = vpop.f32.mrf.mxu0
      %v1386 = vadd.f32 %v1198, %v1385
      %v1387 = vpop.f32.mrf.mxu0
      %1388 = vmatprep.mubr.bf16.mxu0 0
      %1389 = vmatmul.mubr.bf16.gmra.mxu0 %v1242
      %v1390 = vpop.f32.mrf.mxu0
      %v1391 = vadd.f32 %v1198, %v1390
      %v1392 = vpop.f32.mrf.mxu0
      %v1393 = vpop.f32.mrf.mxu0
      %v1394 = vadd.f32 %v1198, %v1393
      %v1395 = vpop.f32.mrf.mxu0
      %1396 = vmatprep.mubr.bf16.mxu0 0
      %1397 = vmatmul.mubr.bf16.gmra.mxu0 %v1244
      %v1398 = vpop.f32.mrf.mxu0
      %v1399 = vadd.f32 %v1198, %v1398
      %v1400 = vpop.f32.mrf.mxu0
      %v1401 = vpop.f32.mrf.mxu0
      %v1402 = vadd.f32 %v1198, %v1401
      %v1403 = vpop.f32.mrf.mxu0
      %1404 = vmatprep.mubr.bf16.mxu0 0
      %1405 = vmatmul.mubr.bf16.gmra.mxu0 %v1246
      %v1406 = vpop.f32.mrf.mxu0
      %v1407 = vadd.f32 %v1198, %v1406
      %v1408 = vpop.f32.mrf.mxu0
      %v1409 = vpop.f32.mrf.mxu0
      %v1410 = vadd.f32 %v1198, %v1409
      %v1411 = vpop.f32.mrf.mxu0
      %1412 = vdwg.mxu0
      %1413 = vxpose.xlu0.b32.start [1/16] %v1287, 128
      %1414 = vxpose.xlu0.b32.cont [2/16] %v1290, 128
      %1415 = vxpose.xlu0.b32.cont [3/16] %v1295, 128
      %1416 = vxpose.xlu0.b32.cont [4/16] %v1298, 128
      %1417 = vxpose.xlu0.b32.cont [5/16] %v1303, 128
      %1418 = vxpose.xlu0.b32.cont [6/16] %v1306, 128
      %1419 = vxpose.xlu0.b32.cont [7/16] %v1311, 128
      %1420 = vxpose.xlu0.b32.cont [8/16] %v1314, 128
      %1421 = vxpose.xlu0.b32.cont [9/16] %v1319, 128
      %1422 = vxpose.xlu0.b32.cont [10/16] %v1322, 128
      %1423 = vxpose.xlu0.b32.cont [11/16] %v1327, 128
      %1424 = vxpose.xlu0.b32.cont [12/16] %v1330, 128
      %1425 = vxpose.xlu0.b32.cont [13/16] %v1335, 128
      %1426 = vxpose.xlu0.b32.cont [14/16] %v1338, 128
      %1427 = vxpose.xlu0.b32.cont [15/16] %v1343, 128
      %1428 = vxpose.xlu0.b32.end [16/16] %v1346, 128
      %v1429 = vpop.trf.xlu0
      %v1430 = vpop.trf.xlu0
      %v1431 = vpop.trf.xlu0
      %v1432 = vpop.trf.xlu0
      %v1433 = vpop.trf.xlu0
      %v1434 = vpop.trf.xlu0
      %v1435 = vpop.trf.xlu0
      %v1436 = vpop.trf.xlu0
      %v1437 = vpop.trf.xlu0
      %v1438 = vpop.trf.xlu0
      %v1439 = vpop.trf.xlu0
      %v1440 = vpop.trf.xlu0
      %v1441 = vpop.trf.xlu0
      %v1442 = vpop.trf.xlu0
      %v1443 = vpop.trf.xlu0
      %v1444 = vpop.trf.xlu0
      %1445 = vxpose.xlu0.b32.start [1/16] %v1351, 128
      %1446 = vxpose.xlu0.b32.cont [2/16] %v1354, 128
      %1447 = vxpose.xlu0.b32.cont [3/16] %v1359, 128
      %1448 = vxpose.xlu0.b32.cont [4/16] %v1362, 128
      %1449 = vxpose.xlu0.b32.cont [5/16] %v1367, 128
      %1450 = vxpose.xlu0.b32.cont [6/16] %v1370, 128
      %1451 = vxpose.xlu0.b32.cont [7/16] %v1375, 128
      %1452 = vxpose.xlu0.b32.cont [8/16] %v1378, 128
      %1453 = vxpose.xlu0.b32.cont [9/16] %v1383, 128
      %1454 = vxpose.xlu0.b32.cont [10/16] %v1386, 128
      %1455 = vxpose.xlu0.b32.cont [11/16] %v1391, 128
      %1456 = vxpose.xlu0.b32.cont [12/16] %v1394, 128
      %1457 = vxpose.xlu0.b32.cont [13/16] %v1399, 128
      %1458 = vxpose.xlu0.b32.cont [14/16] %v1402, 128
      %1459 = vxpose.xlu0.b32.cont [15/16] %v1407, 128
      %1460 = vxpose.xlu0.b32.end [16/16] %v1410, 128
      %v1461 = vpop.trf.xlu0
      %v1462 = vpop.trf.xlu0
      %v1463 = vpop.trf.xlu0
      %v1464 = vpop.trf.xlu0
      %v1465 = vpop.trf.xlu0
      %v1466 = vpop.trf.xlu0
      %v1467 = vpop.trf.xlu0
      %v1468 = vpop.trf.xlu0
      %v1469 = vpop.trf.xlu0
      %v1470 = vpop.trf.xlu0
      %v1471 = vpop.trf.xlu0
      %v1472 = vpop.trf.xlu0
      %v1473 = vpop.trf.xlu0
      %v1474 = vpop.trf.xlu0
      %v1475 = vpop.trf.xlu0
      %v1476 = vpop.trf.xlu0
      %1477 = vst [vmem:[%s192] sm:$0xff] %v1429
      %1478 = vst [vmem:[%s192 + $0x8] sm:$0xff] %v1461
      %p1479 = scmp.lt.s32.totalorder %s18, 1
      %s1480 = scalar_select %p1479, %s18, 1
      %p1481 = scmp.lt.s32.totalorder %s19, 0
      %s1482 = scalar_select %p1481, %s19, 0
      %s1483 = smul.addr %s1482, 2
      %s1484 = smul.addr %s1480, 2
      %s1485 = sadd.s32 %s1483, %s1484
      %s1486 = smul.addr %s1485, 8
      %s1487 = scalar_lea.vmem %s3, %s1486
      // Predicated region
      $region33: #{analyzed_conv2d.1} parent=31 // pred_check
        %p1488 = pneg %p114
      $region34: #{analyzed_conv2d.1} parent=31 // pred_check_branch
        %1490 = sbr.rel (%p1488) target = $region36
      $region35: #{analyzed_conv2d.1} parent=31 // pred_region
        _
      $region36: #{analyzed_conv2d.1} parent=31 // pred_fallthru
        _
    $region32: #{analyzed_conv2d.1} parent=5 // pred_fallthru
      _
    %p1491 = scmp.le.s32.totalorder 2, %s9
    // Predicated region
    $region37: #{analyzed_conv2d.1} parent=5 // pred_check
      %p1492 = pneg %p1491
    $region38: #{analyzed_conv2d.1} parent=5 // pred_check_branch
      %1494 = sbr.rel (%p1492) target = $region40
    $region39: #{analyzed_conv2d.1} parent=5 // pred_region
      %s1495 = ssub.s32 %s9, 2
      // Predicated region
      $region41: #{analyzed_conv2d.1} parent=39 // pred_check
        %p1496 = pneg %p120
      $region42: #{analyzed_conv2d.1} parent=39 // pred_check_branch
        %1498 = sbr.rel (%p1496) target = $region44
      $region43: #{analyzed_conv2d.1} parent=39 // pred_region
        %p1499 = scmp.lt.s32.totalorder %s20, 1
        %s1500 = scalar_select %p1499, %s20, 1
        %p1501 = scmp.lt.s32.totalorder %s21, 0
        %s1502 = scalar_select %p1501, %s21, 0
        %s1503 = smul.addr %s1502, 2
        %s1504 = smul.addr %s1500, 2
        %s1505 = sadd.s32 %s1503, %s1504
        %s1506 = smul.addr %s1505, 8
        %s1507 = scalar_lea.vmem %s3, %s1506
      $region44: #{analyzed_conv2d.1} parent=39 // pred_fallthru
        _
    $region40: #{analyzed_conv2d.1} parent=5 // pred_fallthru
      _
  $region6: #{analyzed_conv2d.1} parent=0 // loop_footer
    %s13 = sadd.s32 1, %s9
  $region7: #{analyzed_conv2d.1} parent=0 // loop_footer_branch
    %8 = sbr.rel target = $region3
  $region8: #{analyzed_conv2d.1} parent=0 // loop_exit
    _

</llo_original>
